<compile_context>
chip_gen: v7x
topology: tpu7x:2x2x1
jax: 0.10.0
libtpu: 0.0.40
codegen_flags: <defaults>
</compile_context>

<pallas_src>
import functools

import jax
import jax.numpy as jnp
from jax.experimental import pallas as pl
from jax.experimental.pallas import tpu as pltpu

_SUBLANE = 8  # f32 sublane count; batch tiles are kept a multiple of this.


def _round_up(x: int, m: int) -> int:
    return ((x + m - 1) // m) * m


def dqn_kernel(x_ref, w1_ref, b1_ref, w2_ref, b2_ref, o_ref, *, mm_dtype):
    # Hidden layer: x @ W1 (MXU, f32 accumulate) + b1, ReLU (VPU, f32).
    # Cast the streamed activations to the matmul dtype *inside* the kernel so
    # the HBM stream stays at the caller's dtype and the cast hides under DMA.
    x = x_ref[...].astype(mm_dtype)
    h = jnp.dot(x, w1_ref[...], preferred_element_type=jnp.float32)
    h = jnp.maximum(h + b1_ref[...], 0.0)
    # Output layer: h @ W2 + b2 (f32 accumulate), single store of the real
    # (unpadded) n_actions columns.
    out = jnp.dot(h.astype(mm_dtype), w2_ref[...],
                  preferred_element_type=jnp.float32)
    o_ref[...] = (out + b2_ref[...]).astype(o_ref.dtype)


@functools.partial(
    jax.jit, static_argnames=("use_bf16_matmul", "batch_tile", "out_dtype"))
def dqn_forward(state, w1, b1, w2, b2, *, use_bf16_matmul=False,
                batch_tile=16384, out_dtype=jnp.float32):
    """state: (B, D_in); w1: (D_in, fc1); b1: (1, fc1); w2: (fc1, A); b2: (1, A).

    Returns Q-values of shape (B, A) in `out_dtype` (default f32).
    """
    B, D_in = state.shape
    fc1 = w1.shape[1]
    n_actions = w2.shape[1]

    # Weights are tiny -> cast them in the wrapper; the streamed batch is NOT
    # cast here (that would add a full extra HBM pass).
    mm_dtype = jnp.bfloat16 if use_bf16_matmul else state.dtype
    w1c = w1.astype(mm_dtype)
    w2c = w2.astype(mm_dtype)
    b1r = b1.reshape(1, fc1).astype(jnp.float32)
    b2r = b2.reshape(1, n_actions).astype(jnp.float32)

    # Batch tile: multiple of 8 sublanes; clamp so large batches always produce
    # >= 2 grid steps (v7x megacore). Last block may be partial (no batch-pad
    # copy); out-of-bounds rows are dropped by the masked output store.
    tb = min(int(batch_tile), _round_up(pl.cdiv(B, 2), _SUBLANE))
    tb = _round_up(max(tb, _SUBLANE), _SUBLANE)
    grid = (pl.cdiv(B, tb),)

    out_itemsize = jnp.dtype(out_dtype).itemsize
    cost = pl.CostEstimate(
        flops=2 * B * (D_in * fc1 + fc1 * n_actions),
        transcendentals=0,
        bytes_accessed=(B * D_in * state.dtype.itemsize
                        + w1c.size * w1c.dtype.itemsize
                        + w2c.size * w2c.dtype.itemsize
                        + b1r.size * 4 + b2r.size * 4
                        + B * n_actions * out_itemsize),
    )

    kernel = functools.partial(dqn_kernel, mm_dtype=mm_dtype)
    return pl.pallas_call(
        kernel,
        out_shape=jax.ShapeDtypeStruct((B, n_actions), out_dtype),
        grid_spec=pl.GridSpec(
            grid=grid,
            in_specs=[
                # Streamed activations: one batch tile per grid step.
                pl.BlockSpec((tb, D_in), lambda i: (i, 0)),
                # Weights / biases: VMEM-resident (same block every step),
                # blocks equal the full (tiny, unpadded) array dims.
                pl.BlockSpec((D_in, fc1), lambda i: (0, 0)),
                pl.BlockSpec((1, fc1), lambda i: (0, 0)),
                pl.BlockSpec((fc1, n_actions), lambda i: (0, 0)),
                pl.BlockSpec((1, n_actions), lambda i: (0, 0)),
            ],
            # Unpadded output: last dim equals the full array dim (legal <128),
            # so no inflated writeback and no wrapper slice pass.
            out_specs=pl.BlockSpec((tb, n_actions), lambda i: (i, 0)),
        ),
        compiler_params=pltpu.CompilerParams(
            # Batch axis is embarrassingly parallel -> megacore sharding on v7x.
            dimension_semantics=("parallel",),
            # Unpadded tiles: tb=16384 uses only a few MiB double-buffered, well
            # within v7x's 64 MiB as well as v5e/v6e's 128 MiB.
            vmem_limit_bytes=32 * 1024 * 1024,
        ),
        cost_estimate=cost,
    )(state, w1c, b1r, w2c, b2r)


def init_params(key, input_dim, fc1_dims, n_actions):
    """Mirror PyTorch nn.Linear default init: U(-1/sqrt(fan_in), 1/sqrt(fan_in))."""
    k1, k2, k3, k4 = jax.random.split(key, 4)
    bound1 = 1.0 / jnp.sqrt(jnp.float32(input_dim))
    bound2 = 1.0 / jnp.sqrt(jnp.float32(fc1_dims))
    w1 = jax.random.uniform(k1, (input_dim, fc1_dims), jnp.float32, -bound1, bound1)
    b1 = jax.random.uniform(k2, (1, fc1_dims), jnp.float32, -bound1, bound1)
    w2 = jax.random.uniform(k3, (fc1_dims, n_actions), jnp.float32, -bound2, bound2)
    b2 = jax.random.uniform(k4, (1, n_actions), jnp.float32, -bound2, bound2)
    return w1, b1, w2, b2


def _reference(state, w1, b1, w2, b2):
    return jnp.maximum(state @ w1 + b1, 0.0) @ w2 + b2


if __name__ == "__main__":
    # TODO(synk): optimizer (Adam) and MSELoss from the module are training-only
    # machinery and are not part of this forward kernel.

    # Shapes implied by the module: input_dims=(16,), fc1_dims=32, n_actions=8.
    B, D_IN, FC1, N_ACT = 8, 16, 32, 8

    key = jax.random.PRNGKey(0)
    k_state, k_params, k_big = jax.random.split(key, 3)
    state = jax.random.normal(k_state, (B, D_IN), dtype=jnp.float32)
    w1, b1, w2, b2 = init_params(k_params, D_IN, FC1, N_ACT)

    # 1) Small batch, f32 path (exact semantics of the PyTorch forward).
    actions = dqn_forward(state, w1, b1, w2, b2)
    actions = jax.block_until_ready(actions)
    ref = _reference(state, w1, b1, w2, b2)
    assert actions.shape == (B, N_ACT)
    assert jnp.allclose(actions, ref, atol=1e-5, rtol=1e-5)

    # 2) Larger batch exercising grid > 1 AND a partial last block
    #    (B=160, tb=64 -> 3 steps of 64/64/32 rows, no batch-pad copy).
    B_big = 160
    state_big = jax.random.normal(k_big, (B_big, D_IN), dtype=jnp.float32)
    actions_big = dqn_forward(state_big, w1, b1, w2, b2, batch_tile=64)
    actions_big = jax.block_until_ready(actions_big)
    ref_big = _reference(state_big, w1, b1, w2, b2)
    assert actions_big.shape == (B_big, N_ACT)
    assert jnp.allclose(actions_big, ref_big, atol=1e-4, rtol=1e-4)

    # 3) bf16-MXU-input path (in-kernel cast; f32 accumulation), loose tolerance.
    actions_bf16 = dqn_forward(state_big, w1, b1, w2, b2,
                               use_bf16_matmul=True, batch_tile=64)
    actions_bf16 = jax.block_until_ready(actions_bf16)
    assert jnp.allclose(actions_bf16, ref_big, atol=5e-2, rtol=5e-2)

    # 4) bf16 output dtype (halved writeback bytes), loose tolerance.
    actions_obf16 = dqn_forward(state_big, w1, b1, w2, b2, batch_tile=64,
                                out_dtype=jnp.bfloat16)
    actions_obf16 = jax.block_until_ready(actions_obf16)
    assert actions_obf16.dtype == jnp.bfloat16
    assert jnp.allclose(actions_obf16.astype(jnp.float32), ref_big,
                        atol=5e-2, rtol=5e-2)

    print("KERNEL_OK")
</pallas_src>

<mosaic_0001>
module attributes {stable_mosaic.version = 11 : i64} {
  func.func @dqn_kernel(%arg0: i32, %arg1: memref<8x16xf32, #tpu.memory_space<vmem>>, %arg2: memref<16x32xf32, #tpu.memory_space<vmem>>, %arg3: memref<1x32xf32, #tpu.memory_space<vmem>>, %arg4: memref<32x8xf32, #tpu.memory_space<vmem>>, %arg5: memref<1x8xf32, #tpu.memory_space<vmem>>, %arg6: memref<8x8xf32, #tpu.memory_space<vmem>>) attributes {dimension_semantics = [#tpu.dimension_semantics<parallel>], iteration_bounds = array<i64: 1>, scalar_prefetch = 0 : i64, scratch_operands = 0 : i64, tpu.core_type = #tpu.core_type<tc>, window_params = [{transform_indices = @transform_0, window_bounds = array<i64: 8, 16>}, {pipeline_mode = #tpu.pipeline_mode<synchronous>, transform_indices = @transform_1, window_bounds = array<i64: 16, 32>}, {pipeline_mode = #tpu.pipeline_mode<synchronous>, transform_indices = @transform_2, window_bounds = array<i64: 1, 32>}, {pipeline_mode = #tpu.pipeline_mode<synchronous>, transform_indices = @transform_3, window_bounds = array<i64: 32, 8>}, {pipeline_mode = #tpu.pipeline_mode<synchronous>, transform_indices = @transform_4, window_bounds = array<i64: 1, 8>}, {transform_indices = @transform_5, window_bounds = array<i64: 8, 8>}]} {
    %c0 = arith.constant 0 : index
    %c0_0 = arith.constant 0 : index
    %0 = vector.load %arg1[%c0, %c0_0] : memref<8x16xf32, #tpu.memory_space<vmem>>, vector<8x16xf32>
    %c0_1 = arith.constant 0 : index
    %c0_2 = arith.constant 0 : index
    %1 = vector.load %arg2[%c0_1, %c0_2] : memref<16x32xf32, #tpu.memory_space<vmem>>, vector<16x32xf32>
    %cst = arith.constant dense<0.000000e+00> : vector<8x32xf32>
    %2 = tpu.matmul %0, %1, %cst {dimension_numbers = #tpu.dot_dimension_numbers<[1], [0], [0], [1], [0, 0, 1, 1], [], []>} : vector<8x16xf32>, vector<16x32xf32>, vector<8x32xf32> -> vector<8x32xf32>
    %c0_3 = arith.constant 0 : index
    %c0_4 = arith.constant 0 : index
    %3 = vector.load %arg3[%c0_3, %c0_4] : memref<1x32xf32, #tpu.memory_space<vmem>>, vector<1x32xf32>
    %4 = vector.broadcast %3 : vector<1x32xf32> to vector<8x32xf32>
    %5 = arith.addf %2, %4 : vector<8x32xf32>
    %cst_5 = arith.constant 0.000000e+00 : f32
    %6 = vector.broadcast %cst_5 : f32 to vector<8x32xf32>
    %7 = arith.maximumf %5, %6 : vector<8x32xf32>
    %c0_6 = arith.constant 0 : index
    %c0_7 = arith.constant 0 : index
    %8 = vector.load %arg4[%c0_6, %c0_7] : memref<32x8xf32, #tpu.memory_space<vmem>>, vector<32x8xf32>
    %cst_8 = arith.constant dense<0.000000e+00> : vector<8x8xf32>
    %9 = tpu.matmul %7, %8, %cst_8 {dimension_numbers = #tpu.dot_dimension_numbers<[1], [0], [0], [1], [0, 0, 1, 1], [], []>} : vector<8x32xf32>, vector<32x8xf32>, vector<8x8xf32> -> vector<8x8xf32>
    %c0_9 = arith.constant 0 : index
    %c0_10 = arith.constant 0 : index
    %10 = vector.load %arg5[%c0_9, %c0_10] : memref<1x8xf32, #tpu.memory_space<vmem>>, vector<1x8xf32>
    %11 = vector.broadcast %10 : vector<1x8xf32> to vector<8x8xf32>
    %12 = arith.addf %9, %11 : vector<8x8xf32>
    %c0_11 = arith.constant 0 : index
    %c0_12 = arith.constant 0 : index
    %13 = vector.load %arg6[%c0_11, %c0_12] : memref<8x8xf32, #tpu.memory_space<vmem>>, vector<8x8xf32>
    tpu.vector_store %arg6[%c0_11, %c0_12], %12 {strides = array<i32>} : memref<8x8xf32, #tpu.memory_space<vmem>>, vector<8x8xf32>,
    return
  }
  func.func @transform_0(%arg0: i32) -> (i32, i32) {
    %c0_i32 = arith.constant 0 : i32
    %c0_i32_0 = arith.constant 0 : i32
    return %arg0, %c0_i32 : i32, i32
  }
  func.func @transform_1(%arg0: i32) -> (i32, i32) {
    %c0_i32 = arith.constant 0 : i32
    %c0_i32_0 = arith.constant 0 : i32
    %c0_i32_1 = arith.constant 0 : i32
    return %c0_i32, %c0_i32_0 : i32, i32
  }
  func.func @transform_2(%arg0: i32) -> (i32, i32) {
    %c0_i32 = arith.constant 0 : i32
    %c0_i32_0 = arith.constant 0 : i32
    %c0_i32_1 = arith.constant 0 : i32
    return %c0_i32, %c0_i32_0 : i32, i32
  }
  func.func @transform_3(%arg0: i32) -> (i32, i32) {
    %c0_i32 = arith.constant 0 : i32
    %c0_i32_0 = arith.constant 0 : i32
    %c0_i32_1 = arith.constant 0 : i32
    return %c0_i32, %c0_i32_0 : i32, i32
  }
  func.func @transform_4(%arg0: i32) -> (i32, i32) {
    %c0_i32 = arith.constant 0 : i32
    %c0_i32_0 = arith.constant 0 : i32
    %c0_i32_1 = arith.constant 0 : i32
    return %c0_i32, %c0_i32_0 : i32, i32
  }
  func.func @transform_5(%arg0: i32) -> (i32, i32) {
    %c0_i32 = arith.constant 0 : i32
    %c0_i32_0 = arith.constant 0 : i32
    return %arg0, %c0_i32 : i32, i32
  }
}

</mosaic_0001>

<llo_original>
// kernel: dqn_forward.1
$region0: #{dqn_forward.1}
  #allocation0 [shape = 'u32[]', space=smem, size = 0x4, offset = 0x4, fixed_abs, tag = 'smem constant byte address 0x4 - core index']
  #allocation1 [shape = 'u32[144,128]{1,0:T(1,128)}', space=vmem, size = 0x12000, scoped, tag = 'internal scratch']
  %s0 = inlined_call_operand.vmem [shape: f32[8,16], index: 0, kind: input, shape index: {}]
  %s1 = inlined_call_operand.vmem [shape: f32[16,32], index: 1, kind: input, shape index: {}]
  %s2 = inlined_call_operand.vmem [shape: f32[1,32], index: 2, kind: input, shape index: {}]
  %s3 = inlined_call_operand.vmem [shape: f32[32,8], index: 3, kind: input, shape index: {}]
  %s4 = inlined_call_operand.vmem [shape: f32[1,8], index: 4, kind: input, shape index: {}]
  %s5 = inlined_call_operand.hbm [shape: f32[8,8], index: 5, kind: output, shape index: {}]
  %s6 = sld [smem:[#allocation0]]
  $region30: #{dqn_forward.1} parent=0
    _
  %s8 = ssub.s32 1, %s6
  %s9 = scalar_select 0, %s8, %s6
  $region1: #{dqn_forward.1} parent=0
    #allocation2 [shape = 'u8[4096]{0}', space=vmem, size = 0x1000, scoped, tag = 'output window, operand 0, single buffered']
    #allocation3 [shape = 's32[1]{0}', space=sflag, size = 0x4, scoped, tag = 'scoped memory for dqn_forward.1']
    %10 = vsyncpa [#allocation3], 0
    // Predicated region
    $region2: #{dqn_forward.1} parent=1 // pred_check
      _
    $region3: #{dqn_forward.1} parent=1 // pred_check_branch
      %12 = sbr.rel (0) target = $region5
    $region4: #{dqn_forward.1} parent=1 // pred_region
      _
    $region5: #{dqn_forward.1} parent=1 // pred_fallthru
      _
    // Predicated region
    $region6: #{dqn_forward.1} parent=1 // pred_check
      _
    $region7: #{dqn_forward.1} parent=1 // pred_check_branch
      %14 = sbr.rel (0) target = $region9
    $region8: #{dqn_forward.1} parent=1 // pred_region
      _
    $region9: #{dqn_forward.1} parent=1 // pred_fallthru
      _
    // Predicated region
    $region10: #{dqn_forward.1} parent=1 // pred_check
      _
    $region11: #{dqn_forward.1} parent=1 // pred_check_branch
      %16 = sbr.rel (0) target = $region13
    $region12: #{dqn_forward.1} parent=1 // pred_region
      _
    $region13: #{dqn_forward.1} parent=1 // pred_fallthru
      _
    // Predicated region
    $region14: #{dqn_forward.1} parent=1 // pred_check
      _
    $region15: #{dqn_forward.1} parent=1 // pred_check_branch
      %18 = sbr.rel (0) target = $region17
    $region16: #{dqn_forward.1} parent=1 // pred_region
      _
    $region17: #{dqn_forward.1} parent=1 // pred_fallthru
      _
    // Predicated region
    $region18: #{dqn_forward.1} parent=1 // pred_check
      _
    $region19: #{dqn_forward.1} parent=1 // pred_check_branch
      %20 = sbr.rel (0) target = $region21
    $region20: #{dqn_forward.1} parent=1 // pred_region
      _
    $region21: #{dqn_forward.1} parent=1 // pred_fallthru
      _
    %v21 = vld [vmem:[%s0] sm:$0xff]
    %v22 = vld [vmem:[%s1] sm:$0xff]
    %v23 = vld [vmem:[%s1 + $0x8] sm:$0xff]
    %v24 = vld [vmem:[%s2] sm:$0x1]
    %v26 = vlaneseq
    %v27 = vshrl.u32 %v26, 7
    %v28 = vsub.s32 0, %v27
    %v29 = vrot.slane %v24, %v28
    %vm31 = vcmask 130048
    %v33 = vsel %vm31, %v21, 0
    %35 = vmatprep.subr.mxu0 0.0
    %36 = vmatpush1.msra.mxu0 %v22
    %37 = vmatprep.subr.mxu0 0.0
    %38 = vmatpush1.msra.mxu0 %v23
    %39 = vmatprep.subr.mxu0 0.0
    %40 = vmatpush1.msra.mxu0 0.0
    %41 = vmatprep.subr.mxu0 0.0
    %42 = vmatpush1.msra.mxu0 0.0
    %43 = vmatprep.subr.mxu0 0.0
    %44 = vmatpush1.msra.mxu0 0.0
    %45 = vmatprep.subr.mxu0 0.0
    %46 = vmatpush1.msra.mxu0 0.0
    %47 = vmatprep.subr.mxu0 0.0
    %48 = vmatpush1.msra.mxu0 0.0
    %49 = vmatprep.subr.mxu0 0.0
    %50 = vmatpush1.msra.mxu0 0.0
    %51 = vmatprep.subr.mxu0 0.0
    %52 = vmatpush1.msra.mxu0 0.0
    %53 = vmatprep.subr.mxu0 0.0
    %54 = vmatpush1.msra.mxu0 0.0
    %55 = vmatprep.subr.mxu0 0.0
    %56 = vmatpush1.msra.mxu0 0.0
    %57 = vmatprep.subr.mxu0 0.0
    %58 = vmatpush1.msra.mxu0 0.0
    %59 = vmatprep.subr.mxu0 0.0
    %60 = vmatpush1.msra.mxu0 0.0
    %61 = vmatprep.subr.mxu0 0.0
    %62 = vmatpush1.msra.mxu0 0.0
    %63 = vmatprep.subr.mxu0 0.0
    %64 = vmatpush1.msra.mxu0 0.0
    %65 = vmatprep.subr.mxu0 0.0
    %66 = vmatpush1.msra.mxu0 0.0
    %67 = vmatprep.subr.mxu0 0.0
    %68 = vmatpush1.msra.mxu0 0.0
    %69 = vmatprep.subr.mxu0 0.0
    %70 = vmatpush1.msra.mxu0 0.0
    %71 = vmatprep.subr.mxu0 0.0
    %72 = vmatpush1.msra.mxu0 0.0
    %73 = vmatprep.subr.mxu0 0.0
    %74 = vmatpush1.msra.mxu0 0.0
    %75 = vmatprep.subr.mxu0 0.0
    %76 = vmatpush1.msra.mxu0 0.0
    %77 = vmatprep.subr.mxu0 0.0
    %78 = vmatpush1.msra.mxu0 0.0
    %79 = vmatprep.subr.mxu0 0.0
    %80 = vmatpush1.msra.mxu0 0.0
    %81 = vmatprep.subr.mxu0 0.0
    %82 = vmatpush1.msra.mxu0 0.0
    %83 = vmatprep.subr.mxu0 0.0
    %84 = vmatpush1.msra.mxu0 0.0
    %85 = vmatprep.subr.mxu0 0.0
    %86 = vmatpush1.msra.mxu0 0.0
    %87 = vmatprep.subr.mxu0 0.0
    %88 = vmatpush1.msra.mxu0 0.0
    %89 = vmatprep.subr.mxu0 0.0
    %90 = vmatpush1.msra.mxu0 0.0
    %91 = vmatprep.subr.mxu0 0.0
    %92 = vmatpush1.msra.mxu0 0.0
    %93 = vmatprep.subr.mxu0 0.0
    %94 = vmatpush1.msra.mxu0 0.0
    %95 = vmatprep.subr.mxu0 0.0
    %96 = vmatpush1.msra.mxu0 0.0
    %97 = vmatprep.subr.mxu0 0.0
    %98 = vmatpush1.msra.mxu0 0.0
    %99 = vmatprep.mubr.f32.mxu0 0.0
    %100 = vmatmul.mubr.f32.gmra.mrb[0].mxu0 %v33
    %v101 = vpop.f32.mrb[0].mxu0
    %v102 = vadd.f32 %v29, %v101
    %v103 = vpop.f32.mrb[0].mxu0
    %104 = vdwg.mxu0
    %v105 = vmax.f32 %v102, 0.0
    %v106 = vld [vmem:[%s3] sm:$0xff]
    %v107 = vld [vmem:[%s3 + $0x8] sm:$0xff]
    %v108 = vld [vmem:[%s3 + $0x10] sm:$0xff]
    %v109 = vld [vmem:[%s3 + $0x18] sm:$0xff]
    %v110 = vld [vmem:[%s4] sm:$0x1]
    %v112 = vlaneseq
    %v113 = vshrl.u32 %v112, 7
    %v114 = vsub.s32 0, %v113
    %v115 = vrot.slane %v110, %v114
    %vm117 = vcmask 261120
    %v119 = vsel %vm117, %v105, 0
    %121 = vmatprep.subr.mxu0 0.0
    %122 = vmatpush1.msra.mxu0 %v106
    %123 = vmatprep.subr.mxu0 0.0
    %124 = vmatpush1.msra.mxu0 %v107
    %125 = vmatprep.subr.mxu0 0.0
    %126 = vmatpush1.msra.mxu0 %v108
    %127 = vmatprep.subr.mxu0 0.0
    %128 = vmatpush1.msra.mxu0 %v109
    %129 = vmatprep.subr.mxu0 0.0
    %130 = vmatpush1.msra.mxu0 0.0
    %131 = vmatprep.subr.mxu0 0.0
    %132 = vmatpush1.msra.mxu0 0.0
    %133 = vmatprep.subr.mxu0 0.0
    %134 = vmatpush1.msra.mxu0 0.0
    %135 = vmatprep.subr.mxu0 0.0
    %136 = vmatpush1.msra.mxu0 0.0
    %137 = vmatprep.subr.mxu0 0.0
    %138 = vmatpush1.msra.mxu0 0.0
    %139 = vmatprep.subr.mxu0 0.0
    %140 = vmatpush1.msra.mxu0 0.0
    %141 = vmatprep.subr.mxu0 0.0
    %142 = vmatpush1.msra.mxu0 0.0
    %143 = vmatprep.subr.mxu0 0.0
    %144 = vmatpush1.msra.mxu0 0.0
    %145 = vmatprep.subr.mxu0 0.0
    %146 = vmatpush1.msra.mxu0 0.0
    %147 = vmatprep.subr.mxu0 0.0
    %148 = vmatpush1.msra.mxu0 0.0
    %149 = vmatprep.subr.mxu0 0.0
    %150 = vmatpush1.msra.mxu0 0.0
    %151 = vmatprep.subr.mxu0 0.0
    %152 = vmatpush1.msra.mxu0 0.0
    %153 = vmatprep.subr.mxu0 0.0
    %154 = vmatpush1.msra.mxu0 0.0
    %155 = vmatprep.subr.mxu0 0.0
    %156 = vmatpush1.msra.mxu0 0.0
    %157 = vmatprep.subr.mxu0 0.0
    %158 = vmatpush1.msra.mxu0 0.0
    %159 = vmatprep.subr.mxu0 0.0
    %160 = vmatpush1.msra.mxu0 0.0
    %161 = vmatprep.subr.mxu0 0.0
    %162 = vmatpush1.msra.mxu0 0.0
    %163 = vmatprep.subr.mxu0 0.0
    %164 = vmatpush1.msra.mxu0 0.0
    %165 = vmatprep.subr.mxu0 0.0
    %166 = vmatpush1.msra.mxu0 0.0
    %167 = vmatprep.subr.mxu0 0.0
    %168 = vmatpush1.msra.mxu0 0.0
    %169 = vmatprep.subr.mxu0 0.0
    %170 = vmatpush1.msra.mxu0 0.0
    %171 = vmatprep.subr.mxu0 0.0
    %172 = vmatpush1.msra.mxu0 0.0
    %173 = vmatprep.subr.mxu0 0.0
    %174 = vmatpush1.msra.mxu0 0.0
    %175 = vmatprep.subr.mxu0 0.0
    %176 = vmatpush1.msra.mxu0 0.0
    %177 = vmatprep.subr.mxu0 0.0
    %178 = vmatpush1.msra.mxu0 0.0
    %179 = vmatprep.subr.mxu0 0.0
    %180 = vmatpush1.msra.mxu0 0.0
    %181 = vmatprep.subr.mxu0 0.0
    %182 = vmatpush1.msra.mxu0 0.0
    %183 = vmatprep.subr.mxu0 0.0
    %184 = vmatpush1.msra.mxu0 0.0
    %185 = vmatprep.mubr.f32.mxu0 0.0
    %186 = vmatmul.mubr.f32.gmra.mrb[0].mxu0 %v119
    %v187 = vpop.f32.mrb[0].mxu0
    %v188 = vadd.f32 %v115, %v187
    %v189 = vpop.f32.mrb[0].mxu0
    %190 = vdwg.mxu0
    %vm191 = vcmask 64512
    %192 = vst.msk [vmem:[#allocation2] sm:$0xff] %vm191, %v188
    // Predicated region
    $region22: #{dqn_forward.1} parent=1 // pred_check
      _
    $region23: #{dqn_forward.1} parent=1 // pred_check_branch
      %194 = sbr.rel (0) target = $region25
    $region24: #{dqn_forward.1} parent=1 // pred_region
      %s196 = ssub.s32 128, 128
      %197 = vsyncadd [#allocation3], %s196
      %s199 = sshll.u32 [#allocation2], 4
      %s200 = int_to_ptr.vmem [resolvable:$true] %s199
      %202 = dma.vmem_to_hbm [thread:$0]  %s200, 128, %s5, [#allocation3]
    $region25: #{dqn_forward.1} parent=1 // pred_fallthru
      _
    // Predicated region
    $region26: #{dqn_forward.1} parent=1 // pred_check
      _
    $region27: #{dqn_forward.1} parent=1 // pred_check_branch
      %204 = sbr.rel (0) target = $region29
    $region28: #{dqn_forward.1} parent=1 // pred_region
      %205 = dma.done [#allocation3], 128
    $region29: #{dqn_forward.1} parent=1 // pred_fallthru
      _
    %206 = vsyncpa [#allocation3], 1

</llo_original>
